<compile_context>
chip_gen: v5e
topology: v5e:2x2
jax: 0.10.0
libtpu: 0.0.40
codegen_flags: <defaults>
</compile_context>

<pallas_src>
import jax
import jax.numpy as jnp
from jax.experimental import pallas as pl
from jax.experimental.pallas import tpu as pltpu

LANES = 128                # vreg lane width
DEFAULT_TILE_ROWS = 512    # 512*128*4B = 256 KiB per buffer; ~1 MiB with
                           # double-buffered in+out -> safe on v5e/v6e/v7x.


def slp_relu_kernel(x_ref, w_ref, b_ref, o_ref):
    # x_ref / o_ref: (tile_rows, 128) f32 VMEM tiles.
    # w_ref / b_ref: (1,) f32 scalars in SMEM.
    w = w_ref[0]                       # scalar weight (out=in=1)
    b = b_ref[0]                       # scalar bias
    y = x_ref[...] * w + b             # == x @ W^T + b for a 1x1 Linear
    o_ref[...] = jnp.maximum(y, jnp.zeros_like(y))


def slp_relu(x, w, b, *, tile_rows=DEFAULT_TILE_ROWS):
    """relu(x @ W^T + b) for nn.Linear(1, 1).

    x: (B, 1) f32, w: (1, 1) f32, b: (1,) f32 -> (B, 1) f32.
    """
    orig_shape = x.shape
    dtype = x.dtype
    n = x.size

    # ---- lane-dense layout: pad flat length up to a whole (rows, 128) slab ----
    rows = -(-n // LANES)                              # ceil(n / 128)
    if rows >= tile_rows:
        block_rows = tile_rows
        padded_rows = -(-rows // tile_rows) * tile_rows
    else:
        # Tiny input: one block equal to the full (rows, 128) array
        # (block == full dim satisfies the (8,128) constraint).
        block_rows = rows
        padded_rows = rows

    flat = x.reshape(-1)
    pad = padded_rows * LANES - n
    if pad:
        flat = jnp.pad(flat, (0, pad))
    x2d = flat.reshape(padded_rows, LANES)

    w_s = w.reshape(1).astype(dtype)                   # SMEM scalar
    b_s = b.reshape(1).astype(dtype)                   # SMEM scalar

    grid = (padded_rows // block_rows,)

    out2d = pl.pallas_call(
        slp_relu_kernel,
        out_shape=jax.ShapeDtypeStruct((padded_rows, LANES), dtype),
        grid=grid,
        in_specs=[
            pl.BlockSpec((block_rows, LANES), lambda i: (i, 0)),   # x tile (VMEM)
            pl.BlockSpec(memory_space=pltpu.MemorySpace.SMEM),     # w scalar
            pl.BlockSpec(memory_space=pltpu.MemorySpace.SMEM),     # b scalar
        ],
        out_specs=pl.BlockSpec((block_rows, LANES), lambda i: (i, 0)),
        compiler_params=pltpu.CompilerParams(
            dimension_semantics=("parallel",),  # independent row tiles; shards across v7x's 2 TCs
        ),
    )(x2d, w_s, b_s)

    # Slice off padding before returning (padded rows hold relu(b), not zeros).
    return out2d.reshape(-1)[:n].reshape(orig_shape)


if __name__ == "__main__":
    key = jax.random.PRNGKey(0)
    kx, kw, kb, kx2 = jax.random.split(key, 4)

    # Parameters mimic nn.Linear(1, 1) init: U(-1, 1) bound for fan_in = 1.
    w = jax.random.uniform(kw, (1, 1), dtype=jnp.float32, minval=-1.0, maxval=1.0)
    b = jax.random.uniform(kb, (1,), dtype=jnp.float32, minval=-1.0, maxval=1.0)

    # Small batch of scalar features, consistent with Linear(1, 1).
    B = 8
    x = jax.random.normal(kx, (B, 1), dtype=jnp.float32)
    out = slp_relu(x, w, b)
    jax.block_until_ready(out)
    ref = jnp.maximum(x @ w.T + b, 0.0)
    assert out.shape == (B, 1)
    assert jnp.allclose(out, ref, atol=1e-6), (out, ref)

    # Larger batch exercises the lane-dense, multi-block, padded pipeline path.
    B2 = 200_000
    x2 = jax.random.normal(kx2, (B2, 1), dtype=jnp.float32)
    out2 = slp_relu(x2, w, b)
    jax.block_until_ready(out2)
    ref2 = jnp.maximum(x2 @ w.T + b, 0.0)
    assert out2.shape == (B2, 1)
    assert jnp.allclose(out2, ref2, atol=1e-6), "large-batch mismatch"

    print("KERNEL_OK")
</pallas_src>

<mosaic_0001>
module attributes {stable_mosaic.version = 11 : i64} {
  func.func @slp_relu_kernel(%arg0: i32, %arg1: memref<1x128xf32, #tpu.memory_space<vmem>>, %arg2: memref<1xf32, #tpu.memory_space<smem>>, %arg3: memref<1xf32, #tpu.memory_space<smem>>, %arg4: memref<1x128xf32, #tpu.memory_space<vmem>>) attributes {dimension_semantics = [#tpu.dimension_semantics<parallel>], iteration_bounds = array<i64: 1>, scalar_prefetch = 0 : i64, scratch_operands = 0 : i64, tpu.core_type = #tpu.core_type<tc>, window_params = [{transform_indices = @transform_0, window_bounds = array<i64: 1, 128>}, {transform_indices = @transform_1, window_bounds = array<i64: 1>}, {transform_indices = @transform_2, window_bounds = array<i64: 1>}, {transform_indices = @transform_3, window_bounds = array<i64: 1, 128>}]} {
    %c0 = arith.constant 0 : index
    %0 = memref.load %arg2[%c0] : memref<1xf32, #tpu.memory_space<smem>>
    %c0_0 = arith.constant 0 : index
    %1 = memref.load %arg3[%c0_0] : memref<1xf32, #tpu.memory_space<smem>>
    %c0_1 = arith.constant 0 : index
    %c0_2 = arith.constant 0 : index
    %2 = vector.load %arg1[%c0_1, %c0_2] : memref<1x128xf32, #tpu.memory_space<vmem>>, vector<1x128xf32>
    %3 = vector.broadcast %0 : f32 to vector<1x128xf32>
    %4 = arith.mulf %2, %3 : vector<1x128xf32>
    %5 = vector.broadcast %1 : f32 to vector<1x128xf32>
    %6 = arith.addf %4, %5 : vector<1x128xf32>
    %cst = arith.constant 0.000000e+00 : f32
    %7 = vector.broadcast %cst : f32 to vector<1x128xf32>
    %8 = arith.maximumf %6, %7 : vector<1x128xf32>
    %c0_3 = arith.constant 0 : index
    %c0_4 = arith.constant 0 : index
    %9 = vector.load %arg4[%c0_3, %c0_4] : memref<1x128xf32, #tpu.memory_space<vmem>>, vector<1x128xf32>
    tpu.vector_store %arg4[%c0_3, %c0_4], %8 {strides = array<i32>} : memref<1x128xf32, #tpu.memory_space<vmem>>, vector<1x128xf32>,
    return
  }
  func.func @transform_0(%arg0: i32) -> (i32, i32) {
    %c0_i32 = arith.constant 0 : i32
    %c0_i32_0 = arith.constant 0 : i32
    return %arg0, %c0_i32 : i32, i32
  }
  func.func @transform_1(%arg0: i32) -> i32 {
    %c0_i32 = arith.constant 0 : i32
    %c0_i32_0 = arith.constant 0 : i32
    return %c0_i32 : i32
  }
  func.func @transform_2(%arg0: i32) -> i32 {
    %c0_i32 = arith.constant 0 : i32
    %c0_i32_0 = arith.constant 0 : i32
    return %c0_i32 : i32
  }
  func.func @transform_3(%arg0: i32) -> (i32, i32) {
    %c0_i32 = arith.constant 0 : i32
    %c0_i32_0 = arith.constant 0 : i32
    return %arg0, %c0_i32 : i32, i32
  }
}

</mosaic_0001>

<llo_original>
// kernel: tpu_custom_call.1
$region0: #{tpu_custom_call.1}
  #allocation0 [shape = 'u32[]', space=smem, size = 0x4, offset = 0x4, fixed_abs, tag = 'smem constant byte address 0x4 - core index']
  #allocation1 [shape = 'u32[72,128]{1,0:T(1,128)}', space=vmem, size = 0x9000, scoped, tag = 'internal scratch']
  #allocation2 [shape = 'f32[1]{0:T(128)S(6)}', space=smem, size = 0x200, scoped, tag = 'scoped memory for tpu_custom_call.1']
  #allocation3 [shape = 'f32[1]{0:T(128)S(6)}', space=smem, size = 0x200, scoped, tag = 'scoped memory for tpu_custom_call.1']
  %s0 = inlined_call_operand.vmem [shape: f32[1,128], index: 0, kind: input, shape index: {}]
  %s1 = inlined_call_operand.<no memory space> [shape: f32[1], index: 1, kind: input, shape index: {}]
  %s2 = inlined_call_operand.<no memory space> [shape: f32[1], index: 2, kind: input, shape index: {}]
  %s3 = inlined_call_operand.hbm [shape: f32[1,128], index: 3, kind: output, shape index: {}]
  %s4 = sld [smem:[#allocation0]]
  $region22: #{tpu_custom_call.1} parent=0
    _
  %s6 = ssub.s32 1, %s4
  %s7 = scalar_select 0, %s6, %s4
  %8 = sst [smem:[#allocation2]] %s1
  %9 = sst [smem:[#allocation3]] %s2
  $region1: #{tpu_custom_call.1} parent=0
    #allocation4 [shape = 'u8[512]{0}', space=vmem, size = 0x400, scoped, tag = 'output window, operand 0, single buffered']
    #allocation5 [shape = 's32[1]{0}', space=sflag, size = 0x4, scoped, tag = 'scoped memory for tpu_custom_call.1']
    %10 = vsyncpa [#allocation5], 0
    // Predicated region
    $region2: #{tpu_custom_call.1} parent=1 // pred_check
      _
    $region3: #{tpu_custom_call.1} parent=1 // pred_check_branch
      %12 = sbr.rel (0) target = $region5
    $region4: #{tpu_custom_call.1} parent=1 // pred_region
      _
    $region5: #{tpu_custom_call.1} parent=1 // pred_fallthru
      _
    // Predicated region
    $region6: #{tpu_custom_call.1} parent=1 // pred_check
      _
    $region7: #{tpu_custom_call.1} parent=1 // pred_check_branch
      %14 = sbr.rel (0) target = $region9
    $region8: #{tpu_custom_call.1} parent=1 // pred_region
      _
    $region9: #{tpu_custom_call.1} parent=1 // pred_fallthru
      _
    // Predicated region
    $region10: #{tpu_custom_call.1} parent=1 // pred_check
      _
    $region11: #{tpu_custom_call.1} parent=1 // pred_check_branch
      %16 = sbr.rel (0) target = $region13
    $region12: #{tpu_custom_call.1} parent=1 // pred_region
      _
    $region13: #{tpu_custom_call.1} parent=1 // pred_fallthru
      _
    %s17 = sld [smem:[#allocation2]]
    %s18 = sld [smem:[#allocation3]]
    %v19 = vld [vmem:[%s0] sm:$0x1]
    %v20 = vstv %s17
    %v21 = vmul.f32 %v19, %v20
    %v22 = vstv %s18
    %v23 = vadd.f32 %v21, %v22
    %v24 = vmax.f32 %v23, 0.0
    %25 = vst [vmem:[#allocation4] sm:$0x1] %v24
    // Predicated region
    $region14: #{tpu_custom_call.1} parent=1 // pred_check
      _
    $region15: #{tpu_custom_call.1} parent=1 // pred_check_branch
      %27 = sbr.rel (0) target = $region17
    $region16: #{tpu_custom_call.1} parent=1 // pred_region
      %29 = vsyncadd [#allocation5], 0
      %s31 = sshll.u32 [#allocation4], 4
      %s32 = int_to_ptr.vmem [resolvable:$true] %s31
      %s33 = sshll.u32 %s3, 4
      %s34 = int_to_ptr.hbm [resolvable:$true] %s33
      %36 = dma.vmem_to_hbm [thread:$0]  %s32, 16, %s34, [#allocation5]
    $region17: #{tpu_custom_call.1} parent=1 // pred_fallthru
      _
    // Predicated region
    $region18: #{tpu_custom_call.1} parent=1 // pred_check
      _
    $region19: #{tpu_custom_call.1} parent=1 // pred_check_branch
      %38 = sbr.rel (0) target = $region21
    $region20: #{tpu_custom_call.1} parent=1 // pred_region
      %40 = dma.done [#allocation5], 16
    $region21: #{tpu_custom_call.1} parent=1 // pred_fallthru
      _
    %41 = vsyncpa [#allocation5], 1

</llo_original>
